<compile_context>
chip_gen: v7x
topology: tpu7x:2x2x1
jax: 0.10.0
libtpu: 0.0.40
codegen_flags: <defaults>
</compile_context>

<pallas_src>
import functools

import jax
import jax.numpy as jnp
from jax.experimental import pallas as pl
from jax.experimental.pallas import tpu as pltpu

LN_EPS = 1e-5  # PyTorch nn.LayerNorm default


def _policy_kernel(
    x_ref,
    w1, b1, g1, be1,
    w2, b2, g2, be2,
    w3, b3, g3, be3,
    w4, b4, g4, be4,
    wh, bh,
    out_ref,
    *,
    action_dim,
):
    def linear(h, w_ref, b_ref):
        # bf16 operands -> native MXU path on v5e/v6e/v7x; f32 accumulate,
        # f32 bias add in the epilogue.
        return (
            jnp.dot(h.astype(jnp.bfloat16), w_ref[...],
                    preferred_element_type=jnp.float32)
            + b_ref[...]
        )

    def relu_ln(h, g_ref, be_ref):
        h = jnp.maximum(h, 0.0)
        inv_n = 1.0 / h.shape[-1]
        # Single-pass statistics: biased var = E[x^2] - E[x]^2 (matches torch LN).
        s1 = jnp.sum(h, axis=-1, keepdims=True)
        s2 = jnp.sum(h * h, axis=-1, keepdims=True)
        mu = s1 * inv_n
        var = jnp.maximum(s2 * inv_n - mu * mu, 0.0)
        hn = (h - mu) * jax.lax.rsqrt(var + LN_EPS)
        return hn * g_ref[...] + be_ref[...]

    h = x_ref[...].astype(jnp.float32)
    h = relu_ln(linear(h, w1, b1), g1, be1)   # obs_dim -> 64
    h = relu_ln(linear(h, w2, b2), g2, be2)   # 64 -> 128
    h = relu_ln(linear(h, w3, b3), g3, be3)   # 128 -> 128
    h = relu_ln(linear(h, w4, b4), g4, be4)   # 128 -> 64

    # Fused heads: one (64, 2*action_dim) matmul -> [mean | log_std].
    head = linear(h, wh, bh)                  # (tile_b, 2*action_dim), f32
    lane = jax.lax.broadcasted_iota(jnp.int32, head.shape, 1)
    std = jnp.exp(jnp.clip(head, -20.0, 2.0))  # clip bounds exp for all lanes
    # Packed lane-dense output: first half mean, second half std.
    out_ref[...] = jnp.where(lane < action_dim, head, std).astype(out_ref.dtype)


def policy_forward(state, params, *, tile_b=512):
    """Returns (mean, std) of the Normal action distribution."""
    B, obs_dim = state.shape
    A = params["wm"].shape[1]

    # Batch tile: multiple of 8 sublanes, capped so activations fit comfortably
    # in scoped VMEM on all chips (incl. v7x's 64 MiB physical VMEM).
    tile_b = max(8, min(int(tile_b), ((B + 7) // 8) * 8))
    tile_b = (tile_b // 8) * 8
    Bp = ((B + tile_b - 1) // tile_b) * tile_b

    x = state.astype(jnp.float32)
    if Bp != B:
        x = jnp.pad(x, ((0, Bp - B), (0, 0)))

    bf16 = jnp.bfloat16
    # Fused head weight/bias: wm||ws -> (64, 2A), bm||bs -> (1, 2A).
    wh = jnp.concatenate([params["wm"], params["ws"]], axis=1).astype(bf16)
    bh = jnp.concatenate([params["bm"], params["bs"]], axis=1).astype(jnp.float32)

    flat_args = [
        x,
        params["w1"].astype(bf16), params["b1"], params["g1"], params["be1"],
        params["w2"].astype(bf16), params["b2"], params["g2"], params["be2"],
        params["w3"].astype(bf16), params["b3"], params["g3"], params["be3"],
        params["w4"].astype(bf16), params["b4"], params["g4"], params["be4"],
        wh, bh,
    ]

    def const_spec(a):
        # Weights / biases: constant block index -> stay resident in VMEM.
        return pl.BlockSpec(a.shape, lambda i: (0, 0))

    in_specs = [pl.BlockSpec((tile_b, obs_dim), lambda i: (i, 0))]
    in_specs += [const_spec(a) for a in flat_args[1:]]
    out_spec = pl.BlockSpec((tile_b, 2 * A), lambda i: (i, 0))

    flops = 2 * Bp * (obs_dim * 64 + 64 * 128 + 128 * 128 + 128 * 64 + 64 * 2 * A)
    transcendentals = Bp * (4 + 2 * A)  # 4 rsqrt (LN) + exp over packed head
    param_bytes = sum(int(a.size) * a.dtype.itemsize for a in flat_args[1:])
    bytes_accessed = param_bytes + Bp * obs_dim * 4 + Bp * 2 * A * 4

    packed = pl.pallas_call(
        functools.partial(_policy_kernel, action_dim=A),
        out_shape=jax.ShapeDtypeStruct((Bp, 2 * A), jnp.float32),
        grid=(Bp // tile_b,),
        in_specs=in_specs,
        out_specs=out_spec,
        compiler_params=pltpu.CompilerParams(
            dimension_semantics=("parallel",),
        ),
        cost_estimate=pl.CostEstimate(
            flops=flops,
            transcendentals=transcendentals,
            bytes_accessed=bytes_accessed,
        ),
    )(*flat_args)

    packed = packed[:B]
    return packed[:, :A], packed[:, A:]


def init_params(key, obs_dim, action_dim):
    """Deterministic synthetic parameters. Linear weights stored as (in, out)."""
    dims = [(obs_dim, 64), (64, 128), (128, 128), (128, 64)]
    params = {}
    keys = jax.random.split(key, 6)
    for idx, (din, dout) in enumerate(dims, start=1):
        kw, kb = jax.random.split(keys[idx - 1])
        scale = 1.0 / jnp.sqrt(din)
        params[f"w{idx}"] = jax.random.uniform(kw, (din, dout), jnp.float32, -scale, scale)
        params[f"b{idx}"] = jax.random.uniform(kb, (1, dout), jnp.float32, -scale, scale)
        params[f"g{idx}"] = jnp.ones((1, dout), jnp.float32)    # LayerNorm weight
        params[f"be{idx}"] = jnp.zeros((1, dout), jnp.float32)  # LayerNorm bias
    # mean head
    kw, kb = jax.random.split(keys[4])
    scale = 1.0 / jnp.sqrt(64)
    params["wm"] = jax.random.uniform(kw, (64, action_dim), jnp.float32, -scale, scale)
    params["bm"] = jax.random.uniform(kb, (1, action_dim), jnp.float32, -scale, scale)
    # log_std head
    kw, kb = jax.random.split(keys[5])
    params["ws"] = jax.random.uniform(kw, (64, action_dim), jnp.float32, -scale, scale)
    params["bs"] = jax.random.uniform(kb, (1, action_dim), jnp.float32, -scale, scale)
    return params


def reference_forward(state, params):
    """Plain-JAX reference mirroring the PyTorch module (same bf16-matmul /
    f32-epilogue recipe as the kernel so parity stays tight)."""

    def lin(h, w, b):
        return jnp.dot(h.astype(jnp.bfloat16), w.astype(jnp.bfloat16),
                       preferred_element_type=jnp.float32) + b

    def ln(h, g, b):
        n = h.shape[-1]
        mu = jnp.sum(h, axis=-1, keepdims=True) / n
        var = jnp.maximum(jnp.sum(h * h, axis=-1, keepdims=True) / n - mu * mu, 0.0)
        return (h - mu) / jnp.sqrt(var + LN_EPS) * g + b

    h = state.astype(jnp.float32)
    for i in range(1, 5):
        h = ln(jnp.maximum(lin(h, params[f"w{i}"], params[f"b{i}"]), 0.0),
               params[f"g{i}"], params[f"be{i}"])
    mean = lin(h, params["wm"], params["bm"])
    log_std = jnp.clip(lin(h, params["ws"], params["bs"]), -20.0, 2.0)
    return mean, jnp.exp(log_std)


if __name__ == "__main__":
    obs_dim, action_dim, batch = 16, 4, 8

    key = jax.random.PRNGKey(0)
    k_params, k_state = jax.random.split(key)
    params = init_params(k_params, obs_dim, action_dim)
    state = jax.random.normal(k_state, (batch, obs_dim), jnp.float32)

    mean, std = policy_forward(state, params)
    jax.block_until_ready((mean, std))

    ref_mean, ref_std = reference_forward(state, params)
    assert mean.shape == (batch, action_dim) and std.shape == (batch, action_dim)
    assert jnp.allclose(mean, ref_mean, atol=2e-3, rtol=2e-3), "mean mismatch"
    assert jnp.allclose(std, ref_std, atol=2e-3, rtol=2e-3), "std mismatch"
    assert bool(jnp.all(std > 0.0)), "std must be positive"

    # TODO(synk): optionally fuse Normal action sampling (pltpu.prng_*) into the
    # kernel epilogue to remove a second tiny launch at B~8 deployment sizes.

    print("KERNEL_OK")
</pallas_src>

<mosaic_0001>
module attributes {stable_mosaic.version = 11 : i64} {
  func.func @_policy_kernel(%arg0: i32, %arg1: memref<8x16xf32, #tpu.memory_space<vmem>>, %arg2: memref<16x64xbf16, #tpu.memory_space<vmem>>, %arg3: memref<1x64xf32, #tpu.memory_space<vmem>>, %arg4: memref<1x64xf32, #tpu.memory_space<vmem>>, %arg5: memref<1x64xf32, #tpu.memory_space<vmem>>, %arg6: memref<64x128xbf16, #tpu.memory_space<vmem>>, %arg7: memref<1x128xf32, #tpu.memory_space<vmem>>, %arg8: memref<1x128xf32, #tpu.memory_space<vmem>>, %arg9: memref<1x128xf32, #tpu.memory_space<vmem>>, %arg10: memref<128x128xbf16, #tpu.memory_space<vmem>>, %arg11: memref<1x128xf32, #tpu.memory_space<vmem>>, %arg12: memref<1x128xf32, #tpu.memory_space<vmem>>, %arg13: memref<1x128xf32, #tpu.memory_space<vmem>>, %arg14: memref<128x64xbf16, #tpu.memory_space<vmem>>, %arg15: memref<1x64xf32, #tpu.memory_space<vmem>>, %arg16: memref<1x64xf32, #tpu.memory_space<vmem>>, %arg17: memref<1x64xf32, #tpu.memory_space<vmem>>, %arg18: memref<64x8xbf16, #tpu.memory_space<vmem>>, %arg19: memref<1x8xf32, #tpu.memory_space<vmem>>, %arg20: memref<8x8xf32, #tpu.memory_space<vmem>>) attributes {dimension_semantics = [#tpu.dimension_semantics<parallel>], iteration_bounds = array<i64: 1>, scalar_prefetch = 0 : i64, scratch_operands = 0 : i64, tpu.core_type = #tpu.core_type<tc>, window_params = [{transform_indices = @transform_0, window_bounds = array<i64: 8, 16>}, {pipeline_mode = #tpu.pipeline_mode<synchronous>, transform_indices = @transform_1, window_bounds = array<i64: 16, 64>}, {pipeline_mode = #tpu.pipeline_mode<synchronous>, transform_indices = @transform_2, window_bounds = array<i64: 1, 64>}, {pipeline_mode = #tpu.pipeline_mode<synchronous>, transform_indices = @transform_3, window_bounds = array<i64: 1, 64>}, {pipeline_mode = #tpu.pipeline_mode<synchronous>, transform_indices = @transform_4, window_bounds = array<i64: 1, 64>}, {pipeline_mode = #tpu.pipeline_mode<synchronous>, transform_indices = @transform_5, window_bounds = array<i64: 64, 128>}, {pipeline_mode = #tpu.pipeline_mode<synchronous>, transform_indices = @transform_6, window_bounds = array<i64: 1, 128>}, {pipeline_mode = #tpu.pipeline_mode<synchronous>, transform_indices = @transform_7, window_bounds = array<i64: 1, 128>}, {pipeline_mode = #tpu.pipeline_mode<synchronous>, transform_indices = @transform_8, window_bounds = array<i64: 1, 128>}, {pipeline_mode = #tpu.pipeline_mode<synchronous>, transform_indices = @transform_9, window_bounds = array<i64: 128, 128>}, {pipeline_mode = #tpu.pipeline_mode<synchronous>, transform_indices = @transform_10, window_bounds = array<i64: 1, 128>}, {pipeline_mode = #tpu.pipeline_mode<synchronous>, transform_indices = @transform_11, window_bounds = array<i64: 1, 128>}, {pipeline_mode = #tpu.pipeline_mode<synchronous>, transform_indices = @transform_12, window_bounds = array<i64: 1, 128>}, {pipeline_mode = #tpu.pipeline_mode<synchronous>, transform_indices = @transform_13, window_bounds = array<i64: 128, 64>}, {pipeline_mode = #tpu.pipeline_mode<synchronous>, transform_indices = @transform_14, window_bounds = array<i64: 1, 64>}, {pipeline_mode = #tpu.pipeline_mode<synchronous>, transform_indices = @transform_15, window_bounds = array<i64: 1, 64>}, {pipeline_mode = #tpu.pipeline_mode<synchronous>, transform_indices = @transform_16, window_bounds = array<i64: 1, 64>}, {pipeline_mode = #tpu.pipeline_mode<synchronous>, transform_indices = @transform_17, window_bounds = array<i64: 64, 8>}, {pipeline_mode = #tpu.pipeline_mode<synchronous>, transform_indices = @transform_18, window_bounds = array<i64: 1, 8>}, {transform_indices = @transform_19, window_bounds = array<i64: 8, 8>}]} {
    %c0 = arith.constant 0 : index
    %c0_0 = arith.constant 0 : index
    %0 = vector.load %arg1[%c0, %c0_0] : memref<8x16xf32, #tpu.memory_space<vmem>>, vector<8x16xf32>
    %1 = arith.truncf %0 : vector<8x16xf32> to vector<8x16xbf16>
    %c0_1 = arith.constant 0 : index
    %c0_2 = arith.constant 0 : index
    %2 = vector.load %arg2[%c0_1, %c0_2] : memref<16x64xbf16, #tpu.memory_space<vmem>>, vector<16x64xbf16>
    %cst = arith.constant dense<0.000000e+00> : vector<8x64xf32>
    %3 = tpu.matmul %1, %2, %cst {dimension_numbers = #tpu.dot_dimension_numbers<[1], [0], [0], [1], [0, 0, 1, 1], [], []>} : vector<8x16xbf16>, vector<16x64xbf16>, vector<8x64xf32> -> vector<8x64xf32>
    %c0_3 = arith.constant 0 : index
    %c0_4 = arith.constant 0 : index
    %4 = vector.load %arg3[%c0_3, %c0_4] : memref<1x64xf32, #tpu.memory_space<vmem>>, vector<1x64xf32>
    %5 = vector.broadcast %4 : vector<1x64xf32> to vector<8x64xf32>
    %6 = arith.addf %3, %5 : vector<8x64xf32>
    %cst_5 = arith.constant 0.000000e+00 : f32
    %7 = vector.broadcast %cst_5 : f32 to vector<8x64xf32>
    %8 = arith.maximumf %6, %7 : vector<8x64xf32>
    %cst_6 = arith.constant dense<0.000000e+00> : vector<8xf32>
    %9 = vector.multi_reduction <add>, %8, %cst_6 [1] : vector<8x64xf32> to vector<8xf32>
    %10 = vector.shape_cast %9 : vector<8xf32> to vector<8x1xf32>
    %11 = arith.mulf %8, %8 : vector<8x64xf32>
    %cst_7 = arith.constant dense<0.000000e+00> : vector<8xf32>
    %12 = vector.multi_reduction <add>, %11, %cst_7 [1] : vector<8x64xf32> to vector<8xf32>
    %13 = vector.shape_cast %12 : vector<8xf32> to vector<8x1xf32>
    %cst_8 = arith.constant 1.562500e-02 : f32
    %14 = vector.broadcast %cst_8 : f32 to vector<8x1xf32>
    %15 = arith.mulf %10, %14 : vector<8x1xf32>
    %cst_9 = arith.constant 1.562500e-02 : f32
    %16 = vector.broadcast %cst_9 : f32 to vector<8x1xf32>
    %17 = arith.mulf %13, %16 : vector<8x1xf32>
    %18 = arith.mulf %15, %15 : vector<8x1xf32>
    %19 = arith.subf %17, %18 : vector<8x1xf32>
    %cst_10 = arith.constant 0.000000e+00 : f32
    %20 = vector.broadcast %cst_10 : f32 to vector<8x1xf32>
    %21 = arith.maximumf %19, %20 : vector<8x1xf32>
    %22 = vector.broadcast %15 : vector<8x1xf32> to vector<8x64xf32>
    %23 = arith.subf %8, %22 : vector<8x64xf32>
    %cst_11 = arith.constant 9.99999974E-6 : f32
    %24 = vector.broadcast %cst_11 : f32 to vector<8x1xf32>
    %25 = arith.addf %21, %24 : vector<8x1xf32>
    %26 = math.rsqrt %25 : vector<8x1xf32>
    %27 = vector.broadcast %26 : vector<8x1xf32> to vector<8x64xf32>
    %28 = arith.mulf %23, %27 : vector<8x64xf32>
    %c0_12 = arith.constant 0 : index
    %c0_13 = arith.constant 0 : index
    %29 = vector.load %arg4[%c0_12, %c0_13] : memref<1x64xf32, #tpu.memory_space<vmem>>, vector<1x64xf32>
    %30 = vector.broadcast %29 : vector<1x64xf32> to vector<8x64xf32>
    %31 = arith.mulf %28, %30 : vector<8x64xf32>
    %c0_14 = arith.constant 0 : index
    %c0_15 = arith.constant 0 : index
    %32 = vector.load %arg5[%c0_14, %c0_15] : memref<1x64xf32, #tpu.memory_space<vmem>>, vector<1x64xf32>
    %33 = vector.broadcast %32 : vector<1x64xf32> to vector<8x64xf32>
    %34 = arith.addf %31, %33 : vector<8x64xf32>
    %35 = arith.truncf %34 : vector<8x64xf32> to vector<8x64xbf16>
    %c0_16 = arith.constant 0 : index
    %c0_17 = arith.constant 0 : index
    %36 = vector.load %arg6[%c0_16, %c0_17] : memref<64x128xbf16, #tpu.memory_space<vmem>>, vector<64x128xbf16>
    %cst_18 = arith.constant dense<0.000000e+00> : vector<8x128xf32>
    %37 = tpu.matmul %35, %36, %cst_18 {dimension_numbers = #tpu.dot_dimension_numbers<[1], [0], [0], [1], [0, 0, 1, 1], [], []>} : vector<8x64xbf16>, vector<64x128xbf16>, vector<8x128xf32> -> vector<8x128xf32>
    %c0_19 = arith.constant 0 : index
    %c0_20 = arith.constant 0 : index
    %38 = vector.load %arg7[%c0_19, %c0_20] : memref<1x128xf32, #tpu.memory_space<vmem>>, vector<1x128xf32>
    %39 = vector.broadcast %38 : vector<1x128xf32> to vector<8x128xf32>
    %40 = arith.addf %37, %39 : vector<8x128xf32>
    %cst_21 = arith.constant 0.000000e+00 : f32
    %41 = vector.broadcast %cst_21 : f32 to vector<8x128xf32>
    %42 = arith.maximumf %40, %41 : vector<8x128xf32>
    %cst_22 = arith.constant dense<0.000000e+00> : vector<8xf32>
    %43 = vector.multi_reduction <add>, %42, %cst_22 [1] : vector<8x128xf32> to vector<8xf32>
    %44 = vector.shape_cast %43 : vector<8xf32> to vector<8x1xf32>
    %45 = arith.mulf %42, %42 : vector<8x128xf32>
    %cst_23 = arith.constant dense<0.000000e+00> : vector<8xf32>
    %46 = vector.multi_reduction <add>, %45, %cst_23 [1] : vector<8x128xf32> to vector<8xf32>
    %47 = vector.shape_cast %46 : vector<8xf32> to vector<8x1xf32>
    %cst_24 = arith.constant 7.812500e-03 : f32
    %48 = vector.broadcast %cst_24 : f32 to vector<8x1xf32>
    %49 = arith.mulf %44, %48 : vector<8x1xf32>
    %cst_25 = arith.constant 7.812500e-03 : f32
    %50 = vector.broadcast %cst_25 : f32 to vector<8x1xf32>
    %51 = arith.mulf %47, %50 : vector<8x1xf32>
    %52 = arith.mulf %49, %49 : vector<8x1xf32>
    %53 = arith.subf %51, %52 : vector<8x1xf32>
    %cst_26 = arith.constant 0.000000e+00 : f32
    %54 = vector.broadcast %cst_26 : f32 to vector<8x1xf32>
    %55 = arith.maximumf %53, %54 : vector<8x1xf32>
    %56 = vector.broadcast %49 : vector<8x1xf32> to vector<8x128xf32>
    %57 = arith.subf %42, %56 : vector<8x128xf32>
    %cst_27 = arith.constant 9.99999974E-6 : f32
    %58 = vector.broadcast %cst_27 : f32 to vector<8x1xf32>
    %59 = arith.addf %55, %58 : vector<8x1xf32>
    %60 = math.rsqrt %59 : vector<8x1xf32>
    %61 = vector.broadcast %60 : vector<8x1xf32> to vector<8x128xf32>
    %62 = arith.mulf %57, %61 : vector<8x128xf32>
    %c0_28 = arith.constant 0 : index
    %c0_29 = arith.constant 0 : index
    %63 = vector.load %arg8[%c0_28, %c0_29] : memref<1x128xf32, #tpu.memory_space<vmem>>, vector<1x128xf32>
    %64 = vector.broadcast %63 : vector<1x128xf32> to vector<8x128xf32>
    %65 = arith.mulf %62, %64 : vector<8x128xf32>
    %c0_30 = arith.constant 0 : index
    %c0_31 = arith.constant 0 : index
    %66 = vector.load %arg9[%c0_30, %c0_31] : memref<1x128xf32, #tpu.memory_space<vmem>>, vector<1x128xf32>
    %67 = vector.broadcast %66 : vector<1x128xf32> to vector<8x128xf32>
    %68 = arith.addf %65, %67 : vector<8x128xf32>
    %69 = arith.truncf %68 : vector<8x128xf32> to vector<8x128xbf16>
    %c0_32 = arith.constant 0 : index
    %c0_33 = arith.constant 0 : index
    %70 = vector.load %arg10[%c0_32, %c0_33] : memref<128x128xbf16, #tpu.memory_space<vmem>>, vector<128x128xbf16>
    %cst_34 = arith.constant dense<0.000000e+00> : vector<8x128xf32>
    %71 = tpu.matmul %69, %70, %cst_34 {dimension_numbers = #tpu.dot_dimension_numbers<[1], [0], [0], [1], [0, 0, 1, 1], [], []>} : vector<8x128xbf16>, vector<128x128xbf16>, vector<8x128xf32> -> vector<8x128xf32>
    %c0_35 = arith.constant 0 : index
    %c0_36 = arith.constant 0 : index
    %72 = vector.load %arg11[%c0_35, %c0_36] : memref<1x128xf32, #tpu.memory_space<vmem>>, vector<1x128xf32>
    %73 = vector.broadcast %72 : vector<1x128xf32> to vector<8x128xf32>
    %74 = arith.addf %71, %73 : vector<8x128xf32>
    %cst_37 = arith.constant 0.000000e+00 : f32
    %75 = vector.broadcast %cst_37 : f32 to vector<8x128xf32>
    %76 = arith.maximumf %74, %75 : vector<8x128xf32>
    %cst_38 = arith.constant dense<0.000000e+00> : vector<8xf32>
    %77 = vector.multi_reduction <add>, %76, %cst_38 [1] : vector<8x128xf32> to vector<8xf32>
    %78 = vector.shape_cast %77 : vector<8xf32> to vector<8x1xf32>
    %79 = arith.mulf %76, %76 : vector<8x128xf32>
    %cst_39 = arith.constant dense<0.000000e+00> : vector<8xf32>
    %80 = vector.multi_reduction <add>, %79, %cst_39 [1] : vector<8x128xf32> to vector<8xf32>
    %81 = vector.shape_cast %80 : vector<8xf32> to vector<8x1xf32>
    %cst_40 = arith.constant 7.812500e-03 : f32
    %82 = vector.broadcast %cst_40 : f32 to vector<8x1xf32>
    %83 = arith.mulf %78, %82 : vector<8x1xf32>
    %cst_41 = arith.constant 7.812500e-03 : f32
    %84 = vector.broadcast %cst_41 : f32 to vector<8x1xf32>
    %85 = arith.mulf %81, %84 : vector<8x1xf32>
    %86 = arith.mulf %83, %83 : vector<8x1xf32>
    %87 = arith.subf %85, %86 : vector<8x1xf32>
    %cst_42 = arith.constant 0.000000e+00 : f32
    %88 = vector.broadcast %cst_42 : f32 to vector<8x1xf32>
    %89 = arith.maximumf %87, %88 : vector<8x1xf32>
    %90 = vector.broadcast %83 : vector<8x1xf32> to vector<8x128xf32>
    %91 = arith.subf %76, %90 : vector<8x128xf32>
    %cst_43 = arith.constant 9.99999974E-6 : f32
    %92 = vector.broadcast %cst_43 : f32 to vector<8x1xf32>
    %93 = arith.addf %89, %92 : vector<8x1xf32>
    %94 = math.rsqrt %93 : vector<8x1xf32>
    %95 = vector.broadcast %94 : vector<8x1xf32> to vector<8x128xf32>
    %96 = arith.mulf %91, %95 : vector<8x128xf32>
    %c0_44 = arith.constant 0 : index
    %c0_45 = arith.constant 0 : index
    %97 = vector.load %arg12[%c0_44, %c0_45] : memref<1x128xf32, #tpu.memory_space<vmem>>, vector<1x128xf32>
    %98 = vector.broadcast %97 : vector<1x128xf32> to vector<8x128xf32>
    %99 = arith.mulf %96, %98 : vector<8x128xf32>
    %c0_46 = arith.constant 0 : index
    %c0_47 = arith.constant 0 : index
    %100 = vector.load %arg13[%c0_46, %c0_47] : memref<1x128xf32, #tpu.memory_space<vmem>>, vector<1x128xf32>
    %101 = vector.broadcast %100 : vector<1x128xf32> to vector<8x128xf32>
    %102 = arith.addf %99, %101 : vector<8x128xf32>
    %103 = arith.truncf %102 : vector<8x128xf32> to vector<8x128xbf16>
    %c0_48 = arith.constant 0 : index
    %c0_49 = arith.constant 0 : index
    %104 = vector.load %arg14[%c0_48, %c0_49] : memref<128x64xbf16, #tpu.memory_space<vmem>>, vector<128x64xbf16>
    %cst_50 = arith.constant dense<0.000000e+00> : vector<8x64xf32>
    %105 = tpu.matmul %103, %104, %cst_50 {dimension_numbers = #tpu.dot_dimension_numbers<[1], [0], [0], [1], [0, 0, 1, 1], [], []>} : vector<8x128xbf16>, vector<128x64xbf16>, vector<8x64xf32> -> vector<8x64xf32>
    %c0_51 = arith.constant 0 : index
    %c0_52 = arith.constant 0 : index
    %106 = vector.load %arg15[%c0_51, %c0_52] : memref<1x64xf32, #tpu.memory_space<vmem>>, vector<1x64xf32>
    %107 = vector.broadcast %106 : vector<1x64xf32> to vector<8x64xf32>
    %108 = arith.addf %105, %107 : vector<8x64xf32>
    %cst_53 = arith.constant 0.000000e+00 : f32
    %109 = vector.broadcast %cst_53 : f32 to vector<8x64xf32>
    %110 = arith.maximumf %108, %109 : vector<8x64xf32>
    %cst_54 = arith.constant dense<0.000000e+00> : vector<8xf32>
    %111 = vector.multi_reduction <add>, %110, %cst_54 [1] : vector<8x64xf32> to vector<8xf32>
    %112 = vector.shape_cast %111 : vector<8xf32> to vector<8x1xf32>
    %113 = arith.mulf %110, %110 : vector<8x64xf32>
    %cst_55 = arith.constant dense<0.000000e+00> : vector<8xf32>
    %114 = vector.multi_reduction <add>, %113, %cst_55 [1] : vector<8x64xf32> to vector<8xf32>
    %115 = vector.shape_cast %114 : vector<8xf32> to vector<8x1xf32>
    %cst_56 = arith.constant 1.562500e-02 : f32
    %116 = vector.broadcast %cst_56 : f32 to vector<8x1xf32>
    %117 = arith.mulf %112, %116 : vector<8x1xf32>
    %cst_57 = arith.constant 1.562500e-02 : f32
    %118 = vector.broadcast %cst_57 : f32 to vector<8x1xf32>
    %119 = arith.mulf %115, %118 : vector<8x1xf32>
    %120 = arith.mulf %117, %117 : vector<8x1xf32>
    %121 = arith.subf %119, %120 : vector<8x1xf32>
    %cst_58 = arith.constant 0.000000e+00 : f32
    %122 = vector.broadcast %cst_58 : f32 to vector<8x1xf32>
    %123 = arith.maximumf %121, %122 : vector<8x1xf32>
    %124 = vector.broadcast %117 : vector<8x1xf32> to vector<8x64xf32>
    %125 = arith.subf %110, %124 : vector<8x64xf32>
    %cst_59 = arith.constant 9.99999974E-6 : f32
    %126 = vector.broadcast %cst_59 : f32 to vector<8x1xf32>
    %127 = arith.addf %123, %126 : vector<8x1xf32>
    %128 = math.rsqrt %127 : vector<8x1xf32>
    %129 = vector.broadcast %128 : vector<8x1xf32> to vector<8x64xf32>
    %130 = arith.mulf %125, %129 : vector<8x64xf32>
    %c0_60 = arith.constant 0 : index
    %c0_61 = arith.constant 0 : index
    %131 = vector.load %arg16[%c0_60, %c0_61] : memref<1x64xf32, #tpu.memory_space<vmem>>, vector<1x64xf32>
    %132 = vector.broadcast %131 : vector<1x64xf32> to vector<8x64xf32>
    %133 = arith.mulf %130, %132 : vector<8x64xf32>
    %c0_62 = arith.constant 0 : index
    %c0_63 = arith.constant 0 : index
    %134 = vector.load %arg17[%c0_62, %c0_63] : memref<1x64xf32, #tpu.memory_space<vmem>>, vector<1x64xf32>
    %135 = vector.broadcast %134 : vector<1x64xf32> to vector<8x64xf32>
    %136 = arith.addf %133, %135 : vector<8x64xf32>
    %137 = arith.truncf %136 : vector<8x64xf32> to vector<8x64xbf16>
    %c0_64 = arith.constant 0 : index
    %c0_65 = arith.constant 0 : index
    %138 = vector.load %arg18[%c0_64, %c0_65] : memref<64x8xbf16, #tpu.memory_space<vmem>>, vector<64x8xbf16>
    %cst_66 = arith.constant dense<0.000000e+00> : vector<8x8xf32>
    %139 = tpu.matmul %137, %138, %cst_66 {dimension_numbers = #tpu.dot_dimension_numbers<[1], [0], [0], [1], [0, 0, 1, 1], [], []>} : vector<8x64xbf16>, vector<64x8xbf16>, vector<8x8xf32> -> vector<8x8xf32>
    %c0_67 = arith.constant 0 : index
    %c0_68 = arith.constant 0 : index
    %140 = vector.load %arg19[%c0_67, %c0_68] : memref<1x8xf32, #tpu.memory_space<vmem>>, vector<1x8xf32>
    %141 = vector.broadcast %140 : vector<1x8xf32> to vector<8x8xf32>
    %142 = arith.addf %139, %141 : vector<8x8xf32>
    %143 = tpu.iota {dimensions = array<i32: 1>} : vector<8x8xi32>
    %cst_69 = arith.constant -2.000000e+01 : f32
    %cst_70 = arith.constant 2.000000e+00 : f32
    %144 = vector.broadcast %cst_69 : f32 to vector<8x8xf32>
    %145 = arith.maximumf %144, %142 : vector<8x8xf32>
    %146 = vector.broadcast %cst_70 : f32 to vector<8x8xf32>
    %147 = arith.minimumf %146, %145 : vector<8x8xf32>
    %148 = math.exp %147 : vector<8x8xf32>
    %c4_i32 = arith.constant 4 : i32
    %149 = vector.broadcast %c4_i32 : i32 to vector<8x8xi32>
    %150 = arith.cmpi slt, %143, %149 : vector<8x8xi32>
    %151 = arith.select %150, %142, %148 : vector<8x8xi1>, vector<8x8xf32>
    %c0_71 = arith.constant 0 : index
    %c0_72 = arith.constant 0 : index
    %152 = vector.load %arg20[%c0_71, %c0_72] : memref<8x8xf32, #tpu.memory_space<vmem>>, vector<8x8xf32>
    tpu.vector_store %arg20[%c0_71, %c0_72], %151 {strides = array<i32>} : memref<8x8xf32, #tpu.memory_space<vmem>>, vector<8x8xf32>,
    return
  }
  func.func @transform_0(%arg0: i32) -> (i32, i32) {
    %c0_i32 = arith.constant 0 : i32
    %c0_i32_0 = arith.constant 0 : i32
    return %arg0, %c0_i32 : i32, i32
  }
  func.func @transform_1(%arg0: i32) -> (i32, i32) {
    %c0_i32 = arith.constant 0 : i32
    %c0_i32_0 = arith.constant 0 : i32
    %c0_i32_1 = arith.constant 0 : i32
    return %c0_i32, %c0_i32_0 : i32, i32
  }
  func.func @transform_2(%arg0: i32) -> (i32, i32) {
    %c0_i32 = arith.constant 0 : i32
    %c0_i32_0 = arith.constant 0 : i32
    %c0_i32_1 = arith.constant 0 : i32
    return %c0_i32, %c0_i32_0 : i32, i32
  }
  func.func @transform_3(%arg0: i32) -> (i32, i32) {
    %c0_i32 = arith.constant 0 : i32
    %c0_i32_0 = arith.constant 0 : i32
    %c0_i32_1 = arith.constant 0 : i32
    return %c0_i32, %c0_i32_0 : i32, i32
  }
  func.func @transform_4(%arg0: i32) -> (i32, i32) {
    %c0_i32 = arith.constant 0 : i32
    %c0_i32_0 = arith.constant 0 : i32
    %c0_i32_1 = arith.constant 0 : i32
    return %c0_i32, %c0_i32_0 : i32, i32
  }
  func.func @transform_5(%arg0: i32) -> (i32, i32) {
    %c0_i32 = arith.constant 0 : i32
    %c0_i32_0 = arith.constant 0 : i32
    %c0_i32_1 = arith.constant 0 : i32
    return %c0_i32, %c0_i32_0 : i32, i32
  }
  func.func @transform_6(%arg0: i32) -> (i32, i32) {
    %c0_i32 = arith.constant 0 : i32
    %c0_i32_0 = arith.constant 0 : i32
    %c0_i32_1 = arith.constant 0 : i32
    return %c0_i32, %c0_i32_0 : i32, i32
  }
  func.func @transform_7(%arg0: i32) -> (i32, i32) {
    %c0_i32 = arith.constant 0 : i32
    %c0_i32_0 = arith.constant 0 : i32
    %c0_i32_1 = arith.constant 0 : i32
    return %c0_i32, %c0_i32_0 : i32, i32
  }
  func.func @transform_8(%arg0: i32) -> (i32, i32) {
    %c0_i32 = arith.constant 0 : i32
    %c0_i32_0 = arith.constant 0 : i32
    %c0_i32_1 = arith.constant 0 : i32
    return %c0_i32, %c0_i32_0 : i32, i32
  }
  func.func @transform_9(%arg0: i32) -> (i32, i32) {
    %c0_i32 = arith.constant 0 : i32
    %c0_i32_0 = arith.constant 0 : i32
    %c0_i32_1 = arith.constant 0 : i32
    return %c0_i32, %c0_i32_0 : i32, i32
  }
  func.func @transform_10(%arg0: i32) -> (i32, i32) {
    %c0_i32 = arith.constant 0 : i32
    %c0_i32_0 = arith.constant 0 : i32
    %c0_i32_1 = arith.constant 0 : i32
    return %c0_i32, %c0_i32_0 : i32, i32
  }
  func.func @transform_11(%arg0: i32) -> (i32, i32) {
    %c0_i32 = arith.constant 0 : i32
    %c0_i32_0 = arith.constant 0 : i32
    %c0_i32_1 = arith.constant 0 : i32
    return %c0_i32, %c0_i32_0 : i32, i32
  }
  func.func @transform_12(%arg0: i32) -> (i32, i32) {
    %c0_i32 = arith.constant 0 : i32
    %c0_i32_0 = arith.constant 0 : i32
    %c0_i32_1 = arith.constant 0 : i32
    return %c0_i32, %c0_i32_0 : i32, i32
  }
  func.func @transform_13(%arg0: i32) -> (i32, i32) {
    %c0_i32 = arith.constant 0 : i32
    %c0_i32_0 = arith.constant 0 : i32
    %c0_i32_1 = arith.constant 0 : i32
    return %c0_i32, %c0_i32_0 : i32, i32
  }
  func.func @transform_14(%arg0: i32) -> (i32, i32) {
    %c0_i32 = arith.constant 0 : i32
    %c0_i32_0 = arith.constant 0 : i32
    %c0_i32_1 = arith.constant 0 : i32
    return %c0_i32, %c0_i32_0 : i32, i32
  }
  func.func @transform_15(%arg0: i32) -> (i32, i32) {
    %c0_i32 = arith.constant 0 : i32
    %c0_i32_0 = arith.constant 0 : i32
    %c0_i32_1 = arith.constant 0 : i32
    return %c0_i32, %c0_i32_0 : i32, i32
  }
  func.func @transform_16(%arg0: i32) -> (i32, i32) {
    %c0_i32 = arith.constant 0 : i32
    %c0_i32_0 = arith.constant 0 : i32
    %c0_i32_1 = arith.constant 0 : i32
    return %c0_i32, %c0_i32_0 : i32, i32
  }
  func.func @transform_17(%arg0: i32) -> (i32, i32) {
    %c0_i32 = arith.constant 0 : i32
    %c0_i32_0 = arith.constant 0 : i32
    %c0_i32_1 = arith.constant 0 : i32
    return %c0_i32, %c0_i32_0 : i32, i32
  }
  func.func @transform_18(%arg0: i32) -> (i32, i32) {
    %c0_i32 = arith.constant 0 : i32
    %c0_i32_0 = arith.constant 0 : i32
    %c0_i32_1 = arith.constant 0 : i32
    return %c0_i32, %c0_i32_0 : i32, i32
  }
  func.func @transform_19(%arg0: i32) -> (i32, i32) {
    %c0_i32 = arith.constant 0 : i32
    %c0_i32_0 = arith.constant 0 : i32
    return %arg0, %c0_i32 : i32, i32
  }
}

</mosaic_0001>

<llo_original>
// kernel: tpu_custom_call.1
$region0: #{tpu_custom_call.1}
  #allocation0 [shape = 'u32[]', space=smem, size = 0x4, offset = 0x4, fixed_abs, tag = 'smem constant byte address 0x4 - core index']
  #allocation1 [shape = 'u32[144,128]{1,0:T(1,128)}', space=vmem, size = 0x12000, scoped, tag = 'internal scratch']
  %s0 = inlined_call_operand.vmem [shape: f32[8,16], index: 0, kind: input, shape index: {}]
  %s1 = inlined_call_operand.vmem [shape: bf16[16,64], index: 1, kind: input, shape index: {}]
  %s2 = inlined_call_operand.vmem [shape: f32[1,64], index: 2, kind: input, shape index: {}]
  %s3 = inlined_call_operand.vmem [shape: f32[1,64], index: 3, kind: input, shape index: {}]
  %s4 = inlined_call_operand.vmem [shape: f32[1,64], index: 4, kind: input, shape index: {}]
  %s5 = inlined_call_operand.vmem [shape: bf16[64,128], index: 5, kind: input, shape index: {}]
  %s6 = inlined_call_operand.vmem [shape: f32[1,128], index: 6, kind: input, shape index: {}]
  %s7 = inlined_call_operand.vmem [shape: f32[1,128], index: 7, kind: input, shape index: {}]
  %s8 = inlined_call_operand.vmem [shape: f32[1,128], index: 8, kind: input, shape index: {}]
  %s9 = inlined_call_operand.vmem [shape: bf16[128,128], index: 9, kind: input, shape index: {}]
  %s10 = inlined_call_operand.vmem [shape: f32[1,128], index: 10, kind: input, shape index: {}]
  %s11 = inlined_call_operand.vmem [shape: f32[1,128], index: 11, kind: input, shape index: {}]
  %s12 = inlined_call_operand.vmem [shape: f32[1,128], index: 12, kind: input, shape index: {}]
  %s13 = inlined_call_operand.vmem [shape: bf16[128,64], index: 13, kind: input, shape index: {}]
  %s14 = inlined_call_operand.vmem [shape: f32[1,64], index: 14, kind: input, shape index: {}]
  %s15 = inlined_call_operand.vmem [shape: f32[1,64], index: 15, kind: input, shape index: {}]
  %s16 = inlined_call_operand.vmem [shape: f32[1,64], index: 16, kind: input, shape index: {}]
  %s17 = inlined_call_operand.vmem [shape: bf16[64,8], index: 17, kind: input, shape index: {}]
  %s18 = inlined_call_operand.vmem [shape: f32[1,8], index: 18, kind: input, shape index: {}]
  %s19 = inlined_call_operand.hbm [shape: f32[8,8], index: 19, kind: output, shape index: {}]
  %s20 = sld [smem:[#allocation0]]
  $region86: #{tpu_custom_call.1} parent=0
    _
  %s22 = ssub.s32 1, %s20
  %s23 = scalar_select 0, %s22, %s20
  $region1: #{tpu_custom_call.1} parent=0
    #allocation2 [shape = 'u8[4096]{0}', space=vmem, size = 0x1000, scoped, tag = 'output window, operand 0, single buffered']
    #allocation3 [shape = 's32[1]{0}', space=sflag, size = 0x4, scoped, tag = 'scoped memory for tpu_custom_call.1']
    %24 = vsyncpa [#allocation3], 0
    // Predicated region
    $region2: #{tpu_custom_call.1} parent=1 // pred_check
      _
    $region3: #{tpu_custom_call.1} parent=1 // pred_check_branch
      %26 = sbr.rel (0) target = $region5
    $region4: #{tpu_custom_call.1} parent=1 // pred_region
      _
    $region5: #{tpu_custom_call.1} parent=1 // pred_fallthru
      _
    // Predicated region
    $region6: #{tpu_custom_call.1} parent=1 // pred_check
      _
    $region7: #{tpu_custom_call.1} parent=1 // pred_check_branch
      %28 = sbr.rel (0) target = $region9
    $region8: #{tpu_custom_call.1} parent=1 // pred_region
      _
    $region9: #{tpu_custom_call.1} parent=1 // pred_fallthru
      _
    // Predicated region
    $region10: #{tpu_custom_call.1} parent=1 // pred_check
      _
    $region11: #{tpu_custom_call.1} parent=1 // pred_check_branch
      %30 = sbr.rel (0) target = $region13
    $region12: #{tpu_custom_call.1} parent=1 // pred_region
      _
    $region13: #{tpu_custom_call.1} parent=1 // pred_fallthru
      _
    // Predicated region
    $region14: #{tpu_custom_call.1} parent=1 // pred_check
      _
    $region15: #{tpu_custom_call.1} parent=1 // pred_check_branch
      %32 = sbr.rel (0) target = $region17
    $region16: #{tpu_custom_call.1} parent=1 // pred_region
      _
    $region17: #{tpu_custom_call.1} parent=1 // pred_fallthru
      _
    // Predicated region
    $region18: #{tpu_custom_call.1} parent=1 // pred_check
      _
    $region19: #{tpu_custom_call.1} parent=1 // pred_check_branch
      %34 = sbr.rel (0) target = $region21
    $region20: #{tpu_custom_call.1} parent=1 // pred_region
      _
    $region21: #{tpu_custom_call.1} parent=1 // pred_fallthru
      _
    // Predicated region
    $region22: #{tpu_custom_call.1} parent=1 // pred_check
      _
    $region23: #{tpu_custom_call.1} parent=1 // pred_check_branch
      %36 = sbr.rel (0) target = $region25
    $region24: #{tpu_custom_call.1} parent=1 // pred_region
      _
    $region25: #{tpu_custom_call.1} parent=1 // pred_fallthru
      _
    // Predicated region
    $region26: #{tpu_custom_call.1} parent=1 // pred_check
      _
    $region27: #{tpu_custom_call.1} parent=1 // pred_check_branch
      %38 = sbr.rel (0) target = $region29
    $region28: #{tpu_custom_call.1} parent=1 // pred_region
      _
    $region29: #{tpu_custom_call.1} parent=1 // pred_fallthru
      _
    // Predicated region
    $region30: #{tpu_custom_call.1} parent=1 // pred_check
      _
    $region31: #{tpu_custom_call.1} parent=1 // pred_check_branch
      %40 = sbr.rel (0) target = $region33
    $region32: #{tpu_custom_call.1} parent=1 // pred_region
      _
    $region33: #{tpu_custom_call.1} parent=1 // pred_fallthru
      _
    // Predicated region
    $region34: #{tpu_custom_call.1} parent=1 // pred_check
      _
    $region35: #{tpu_custom_call.1} parent=1 // pred_check_branch
      %42 = sbr.rel (0) target = $region37
    $region36: #{tpu_custom_call.1} parent=1 // pred_region
      _
    $region37: #{tpu_custom_call.1} parent=1 // pred_fallthru
      _
    // Predicated region
    $region38: #{tpu_custom_call.1} parent=1 // pred_check
      _
    $region39: #{tpu_custom_call.1} parent=1 // pred_check_branch
      %44 = sbr.rel (0) target = $region41
    $region40: #{tpu_custom_call.1} parent=1 // pred_region
      _
    $region41: #{tpu_custom_call.1} parent=1 // pred_fallthru
      _
    // Predicated region
    $region42: #{tpu_custom_call.1} parent=1 // pred_check
      _
    $region43: #{tpu_custom_call.1} parent=1 // pred_check_branch
      %46 = sbr.rel (0) target = $region45
    $region44: #{tpu_custom_call.1} parent=1 // pred_region
      _
    $region45: #{tpu_custom_call.1} parent=1 // pred_fallthru
      _
    // Predicated region
    $region46: #{tpu_custom_call.1} parent=1 // pred_check
      _
    $region47: #{tpu_custom_call.1} parent=1 // pred_check_branch
      %48 = sbr.rel (0) target = $region49
    $region48: #{tpu_custom_call.1} parent=1 // pred_region
      _
    $region49: #{tpu_custom_call.1} parent=1 // pred_fallthru
      _
    // Predicated region
    $region50: #{tpu_custom_call.1} parent=1 // pred_check
      _
    $region51: #{tpu_custom_call.1} parent=1 // pred_check_branch
      %50 = sbr.rel (0) target = $region53
    $region52: #{tpu_custom_call.1} parent=1 // pred_region
      _
    $region53: #{tpu_custom_call.1} parent=1 // pred_fallthru
      _
    // Predicated region
    $region54: #{tpu_custom_call.1} parent=1 // pred_check
      _
    $region55: #{tpu_custom_call.1} parent=1 // pred_check_branch
      %52 = sbr.rel (0) target = $region57
    $region56: #{tpu_custom_call.1} parent=1 // pred_region
      _
    $region57: #{tpu_custom_call.1} parent=1 // pred_fallthru
      _
    // Predicated region
    $region58: #{tpu_custom_call.1} parent=1 // pred_check
      _
    $region59: #{tpu_custom_call.1} parent=1 // pred_check_branch
      %54 = sbr.rel (0) target = $region61
    $region60: #{tpu_custom_call.1} parent=1 // pred_region
      _
    $region61: #{tpu_custom_call.1} parent=1 // pred_fallthru
      _
    // Predicated region
    $region62: #{tpu_custom_call.1} parent=1 // pred_check
      _
    $region63: #{tpu_custom_call.1} parent=1 // pred_check_branch
      %56 = sbr.rel (0) target = $region65
    $region64: #{tpu_custom_call.1} parent=1 // pred_region
      _
    $region65: #{tpu_custom_call.1} parent=1 // pred_fallthru
      _
    // Predicated region
    $region66: #{tpu_custom_call.1} parent=1 // pred_check
      _
    $region67: #{tpu_custom_call.1} parent=1 // pred_check_branch
      %58 = sbr.rel (0) target = $region69
    $region68: #{tpu_custom_call.1} parent=1 // pred_region
      _
    $region69: #{tpu_custom_call.1} parent=1 // pred_fallthru
      _
    // Predicated region
    $region70: #{tpu_custom_call.1} parent=1 // pred_check
      _
    $region71: #{tpu_custom_call.1} parent=1 // pred_check_branch
      %60 = sbr.rel (0) target = $region73
    $region72: #{tpu_custom_call.1} parent=1 // pred_region
      _
    $region73: #{tpu_custom_call.1} parent=1 // pred_fallthru
      _
    // Predicated region
    $region74: #{tpu_custom_call.1} parent=1 // pred_check
      _
    $region75: #{tpu_custom_call.1} parent=1 // pred_check_branch
      %62 = sbr.rel (0) target = $region77
    $region76: #{tpu_custom_call.1} parent=1 // pred_region
      _
    $region77: #{tpu_custom_call.1} parent=1 // pred_fallthru
      _
    %v64 = vld [vmem:[%s0] sm:$0xff]
    %v65 = vpack.c.bf16 %v64, %v64
    %v66 = vld [vmem:[%s1] sm:$0xf]
    %v67 = vld [vmem:[%s1 + $0x4] sm:$0xf]
    %v68 = vld [vmem:[%s2] sm:$0x1]
    %v70 = vlaneseq
    %v71 = vshrl.u32 %v70, 7
    %v72 = vsub.s32 0, %v71
    %v73 = vrot.slane %v68, %v72
    %v77 = vunpack.c.l.b16 %v66
    %v78 = vunpack.c.l.b16 %v67
    %v79 = vpack.c.b16 %v78, %v77
    %vm81 = vcmask 130048
    %v83 = vsel %vm81, %v65, 0
    %85 = vmatprep.subr.bf16.mxu0 0
    %86 = vmatpush1.bf16.msra.mxu0 %v79
    %87 = vmatprep.subr.bf16.mxu0 0
    %88 = vmatpush1.bf16.msra.mxu0 0
    %89 = vmatprep.subr.bf16.mxu0 0
    %90 = vmatpush1.bf16.msra.mxu0 0
    %91 = vmatprep.subr.bf16.mxu0 0
    %92 = vmatpush1.bf16.msra.mxu0 0
    %93 = vmatprep.subr.bf16.mxu0 0
    %94 = vmatpush1.bf16.msra.mxu0 0
    %95 = vmatprep.subr.bf16.mxu0 0
    %96 = vmatpush1.bf16.msra.mxu0 0
    %97 = vmatprep.subr.bf16.mxu0 0
    %98 = vmatpush1.bf16.msra.mxu0 0
    %99 = vmatprep.subr.bf16.mxu0 0
    %100 = vmatpush1.bf16.msra.mxu0 0
    %101 = vmatprep.subr.bf16.mxu0 0
    %102 = vmatpush1.bf16.msra.mxu0 0
    %103 = vmatprep.subr.bf16.mxu0 0
    %104 = vmatpush1.bf16.msra.mxu0 0
    %105 = vmatprep.subr.bf16.mxu0 0
    %106 = vmatpush1.bf16.msra.mxu0 0
    %107 = vmatprep.subr.bf16.mxu0 0
    %108 = vmatpush1.bf16.msra.mxu0 0
    %109 = vmatprep.subr.bf16.mxu0 0
    %110 = vmatpush1.bf16.msra.mxu0 0
    %111 = vmatprep.subr.bf16.mxu0 0
    %112 = vmatpush1.bf16.msra.mxu0 0
    %113 = vmatprep.subr.bf16.mxu0 0
    %114 = vmatpush1.bf16.msra.mxu0 0
    %115 = vmatprep.subr.bf16.mxu0 0
    %116 = vmatpush1.bf16.msra.mxu0 0
    %117 = vmatprep.mubr.bf16.mxu0 0
    %118 = vmatmul.mubr.bf16.gmra.mrb[0].mxu0 %v83
    %v119 = vpop.f32.mrb[0].mxu0
    %v120 = vadd.f32 %v73, %v119
    %v121 = vpop.f32.mrb[0].mxu0
    %v122 = vpop.f32.mrb[0].mxu0
    %v123 = vpop.f32.mrb[0].mxu0
    %124 = vdwg.mxu0
    %v125 = vmax.f32 %v120, 0.0
    %vm126 = vcmask 523264
    %v127 = vsel %vm126, %v125, 0.0
    %128 = vadd.xlane.f32.xlu0 %v127
    %v129 = vpop.xlane.xlu0 %128
    %v130 = vmul.f32 %v125, %v125
    %v131 = vsel %vm126, %v130, 0.0
    %132 = vadd.xlane.f32.xlu0 %v131
    %v133 = vpop.xlane.xlu0 %132
    %v134 = vmul.f32 %v129, 0.015625
    %v135 = vmul.f32 %v133, 0.015625
    %v136 = vmul.f32 %v134, %v134
    %v137 = vsub.f32 %v135, %v136
    %v138 = vmax.f32 %v137, 0.0
    %v139 = vsub.f32 %v125, %v134
    %v140 = vadd.f32 %v138, 1e-05
    %v141 = vrsqrt.pop %v140
    %v142 = vmul.f32 %v139, %v141
    %v143 = vld [vmem:[%s3] sm:$0x1]
    %v145 = vlaneseq
    %v146 = vshrl.u32 %v145, 7
    %v147 = vsub.s32 0, %v146
    %v148 = vrot.slane %v143, %v147
    %v150 = vmul.f32 %v142, %v148
    %v151 = vld [vmem:[%s4] sm:$0x1]
    %v153 = vlaneseq
    %v154 = vshrl.u32 %v153, 7
    %v155 = vsub.s32 0, %v154
    %v156 = vrot.slane %v151, %v155
    %v158 = vadd.f32 %v150, %v156
    %v159 = vpack.c.bf16 %v158, %v158
    %v160 = vld [vmem:[%s5] sm:$0xf]
    %v161 = vld [vmem:[%s5 + $0x4] sm:$0xf]
    %v162 = vld [vmem:[%s5 + $0x8] sm:$0xf]
    %v163 = vld [vmem:[%s5 + $0xc] sm:$0xf]
    %v164 = vld [vmem:[%s5 + $0x10] sm:$0xf]
    %v165 = vld [vmem:[%s5 + $0x14] sm:$0xf]
    %v166 = vld [vmem:[%s5 + $0x18] sm:$0xf]
    %v167 = vld [vmem:[%s5 + $0x1c] sm:$0xf]
    %v168 = vld [vmem:[%s6] sm:$0x1]
    %v170 = vlaneseq
    %v171 = vshrl.u32 %v170, 7
    %v172 = vsub.s32 0, %v171
    %v173 = vrot.slane %v168, %v172
    %v183 = vunpack.c.l.b16 %v160
    %v184 = vunpack.c.l.b16 %v161
    %v185 = vunpack.c.l.b16 %v162
    %v186 = vunpack.c.l.b16 %v163
    %v187 = vunpack.c.l.b16 %v164
    %v188 = vunpack.c.l.b16 %v165
    %v189 = vunpack.c.l.b16 %v166
    %v190 = vunpack.c.l.b16 %v167
    %v191 = vpack.c.b16 %v184, %v183
    %v192 = vpack.c.b16 %v186, %v185
    %v193 = vpack.c.b16 %v188, %v187
    %v194 = vpack.c.b16 %v190, %v189
    %v200 = vsel %vm126, %v159, 0
    %202 = vmatprep.subr.bf16.mxu0 0
    %203 = vmatpush1.bf16.msra.mxu0 %v191
    %204 = vmatprep.subr.bf16.mxu0 0
    %205 = vmatpush1.bf16.msra.mxu0 %v192
    %206 = vmatprep.subr.bf16.mxu0 0
    %207 = vmatpush1.bf16.msra.mxu0 %v193
    %208 = vmatprep.subr.bf16.mxu0 0
    %209 = vmatpush1.bf16.msra.mxu0 %v194
    %210 = vmatprep.subr.bf16.mxu0 0
    %211 = vmatpush1.bf16.msra.mxu0 0
    %212 = vmatprep.subr.bf16.mxu0 0
    %213 = vmatpush1.bf16.msra.mxu0 0
    %214 = vmatprep.subr.bf16.mxu0 0
    %215 = vmatpush1.bf16.msra.mxu0 0
    %216 = vmatprep.subr.bf16.mxu0 0
    %217 = vmatpush1.bf16.msra.mxu0 0
    %218 = vmatprep.subr.bf16.mxu0 0
    %219 = vmatpush1.bf16.msra.mxu0 0
    %220 = vmatprep.subr.bf16.mxu0 0
    %221 = vmatpush1.bf16.msra.mxu0 0
    %222 = vmatprep.subr.bf16.mxu0 0
    %223 = vmatpush1.bf16.msra.mxu0 0
    %224 = vmatprep.subr.bf16.mxu0 0
    %225 = vmatpush1.bf16.msra.mxu0 0
    %226 = vmatprep.subr.bf16.mxu0 0
    %227 = vmatpush1.bf16.msra.mxu0 0
    %228 = vmatprep.subr.bf16.mxu0 0
    %229 = vmatpush1.bf16.msra.mxu0 0
    %230 = vmatprep.subr.bf16.mxu0 0
    %231 = vmatpush1.bf16.msra.mxu0 0
    %232 = vmatprep.subr.bf16.mxu0 0
    %233 = vmatpush1.bf16.msra.mxu0 0
    %234 = vmatprep.mubr.bf16.mxu0 0
    %235 = vmatmul.mubr.bf16.gmra.mrb[0].mxu0 %v200
    %v236 = vpop.f32.mrb[0].mxu0
    %v237 = vadd.f32 %v173, %v236
    %v238 = vpop.f32.mrb[0].mxu0
    %v239 = vpop.f32.mrb[0].mxu0
    %v240 = vpop.f32.mrb[0].mxu0
    %241 = vdwg.mxu0
    %v242 = vmax.f32 %v237, 0.0
    %243 = vadd.xlane.f32.xlu0 %v242
    %v244 = vpop.xlane.xlu0 %243
    %v245 = vmul.f32 %v242, %v242
    %246 = vadd.xlane.f32.xlu0 %v245
    %v247 = vpop.xlane.xlu0 %246
    %v248 = vmul.f32 %v244, 0.0078125
    %v249 = vmul.f32 %v247, 0.0078125
    %v250 = vmul.f32 %v248, %v248
    %v251 = vsub.f32 %v249, %v250
    %v252 = vmax.f32 %v251, 0.0
    %v253 = vsub.f32 %v242, %v248
    %v254 = vadd.f32 %v252, 1e-05
    %v255 = vrsqrt.pop %v254
    %v256 = vmul.f32 %v253, %v255
    %v257 = vld [vmem:[%s7] sm:$0x1]
    %v259 = vlaneseq
    %v260 = vshrl.u32 %v259, 7
    %v261 = vsub.s32 0, %v260
    %v262 = vrot.slane %v257, %v261
    %v264 = vmul.f32 %v256, %v262
    %v265 = vld [vmem:[%s8] sm:$0x1]
    %v267 = vlaneseq
    %v268 = vshrl.u32 %v267, 7
    %v269 = vsub.s32 0, %v268
    %v270 = vrot.slane %v265, %v269
    %v272 = vadd.f32 %v264, %v270
    %v273 = vpack.c.bf16 %v272, %v272
    %v274 = vld [vmem:[%s9] sm:$0xf]
    %v275 = vld [vmem:[%s9 + $0x4] sm:$0xf]
    %v276 = vld [vmem:[%s9 + $0x8] sm:$0xf]
    %v277 = vld [vmem:[%s9 + $0xc] sm:$0xf]
    %v278 = vld [vmem:[%s9 + $0x10] sm:$0xf]
    %v279 = vld [vmem:[%s9 + $0x14] sm:$0xf]
    %v280 = vld [vmem:[%s9 + $0x18] sm:$0xf]
    %v281 = vld [vmem:[%s9 + $0x1c] sm:$0xf]
    %v282 = vld [vmem:[%s9 + $0x20] sm:$0xf]
    %v283 = vld [vmem:[%s9 + $0x24] sm:$0xf]
    %v284 = vld [vmem:[%s9 + $0x28] sm:$0xf]
    %v285 = vld [vmem:[%s9 + $0x2c] sm:$0xf]
    %v286 = vld [vmem:[%s9 + $0x30] sm:$0xf]
    %v287 = vld [vmem:[%s9 + $0x34] sm:$0xf]
    %v288 = vld [vmem:[%s9 + $0x38] sm:$0xf]
    %v289 = vld [vmem:[%s9 + $0x3c] sm:$0xf]
    %v290 = vld [vmem:[%s10] sm:$0x1]
    %v292 = vlaneseq
    %v293 = vshrl.u32 %v292, 7
    %v294 = vsub.s32 0, %v293
    %v295 = vrot.slane %v290, %v294
    %v313 = vunpack.c.l.b16 %v274
    %v314 = vunpack.c.l.b16 %v275
    %v315 = vunpack.c.l.b16 %v276
    %v316 = vunpack.c.l.b16 %v277
    %v317 = vunpack.c.l.b16 %v278
    %v318 = vunpack.c.l.b16 %v279
    %v319 = vunpack.c.l.b16 %v280
    %v320 = vunpack.c.l.b16 %v281
    %v321 = vunpack.c.l.b16 %v282
    %v322 = vunpack.c.l.b16 %v283
    %v323 = vunpack.c.l.b16 %v284
    %v324 = vunpack.c.l.b16 %v285
    %v325 = vunpack.c.l.b16 %v286
    %v326 = vunpack.c.l.b16 %v287
    %v327 = vunpack.c.l.b16 %v288
    %v328 = vunpack.c.l.b16 %v289
    %v329 = vpack.c.b16 %v314, %v313
    %v330 = vpack.c.b16 %v316, %v315
    %v331 = vpack.c.b16 %v318, %v317
    %v332 = vpack.c.b16 %v320, %v319
    %v333 = vpack.c.b16 %v322, %v321
    %v334 = vpack.c.b16 %v324, %v323
    %v335 = vpack.c.b16 %v326, %v325
    %v336 = vpack.c.b16 %v328, %v327
    %345 = vmatprep.subr.bf16.mxu0 0
    %346 = vmatpush1.bf16.msra.mxu0 %v329
    %347 = vmatprep.subr.bf16.mxu0 0
    %348 = vmatpush1.bf16.msra.mxu0 %v330
    %349 = vmatprep.subr.bf16.mxu0 0
    %350 = vmatpush1.bf16.msra.mxu0 %v331
    %351 = vmatprep.subr.bf16.mxu0 0
    %352 = vmatpush1.bf16.msra.mxu0 %v332
    %353 = vmatprep.subr.bf16.mxu0 0
    %354 = vmatpush1.bf16.msra.mxu0 %v333
    %355 = vmatprep.subr.bf16.mxu0 0
    %356 = vmatpush1.bf16.msra.mxu0 %v334
    %357 = vmatprep.subr.bf16.mxu0 0
    %358 = vmatpush1.bf16.msra.mxu0 %v335
    %359 = vmatprep.subr.bf16.mxu0 0
    %360 = vmatpush1.bf16.msra.mxu0 %v336
    %361 = vmatprep.subr.bf16.mxu0 0
    %362 = vmatpush1.bf16.msra.mxu0 0
    %363 = vmatprep.subr.bf16.mxu0 0
    %364 = vmatpush1.bf16.msra.mxu0 0
    %365 = vmatprep.subr.bf16.mxu0 0
    %366 = vmatpush1.bf16.msra.mxu0 0
    %367 = vmatprep.subr.bf16.mxu0 0
    %368 = vmatpush1.bf16.msra.mxu0 0
    %369 = vmatprep.subr.bf16.mxu0 0
    %370 = vmatpush1.bf16.msra.mxu0 0
    %371 = vmatprep.subr.bf16.mxu0 0
    %372 = vmatpush1.bf16.msra.mxu0 0
    %373 = vmatprep.subr.bf16.mxu0 0
    %374 = vmatpush1.bf16.msra.mxu0 0
    %375 = vmatprep.subr.bf16.mxu0 0
    %376 = vmatpush1.bf16.msra.mxu0 0
    %377 = vmatprep.mubr.bf16.mxu0 0
    %378 = vmatmul.mubr.bf16.gmra.mrb[0].mxu0 %v273
    %v379 = vpop.f32.mrb[0].mxu0
    %v380 = vadd.f32 %v295, %v379
    %v381 = vpop.f32.mrb[0].mxu0
    %v382 = vpop.f32.mrb[0].mxu0
    %v383 = vpop.f32.mrb[0].mxu0
    %384 = vdwg.mxu0
    %v385 = vmax.f32 %v380, 0.0
    %386 = vadd.xlane.f32.xlu0 %v385
    %v387 = vpop.xlane.xlu0 %386
    %v388 = vmul.f32 %v385, %v385
    %389 = vadd.xlane.f32.xlu0 %v388
    %v390 = vpop.xlane.xlu0 %389
    %v391 = vmul.f32 %v387, 0.0078125
    %v392 = vmul.f32 %v390, 0.0078125
    %v393 = vmul.f32 %v391, %v391
    %v394 = vsub.f32 %v392, %v393
    %v395 = vmax.f32 %v394, 0.0
    %v396 = vsub.f32 %v385, %v391
    %v397 = vadd.f32 %v395, 1e-05
    %v398 = vrsqrt.pop %v397
    %v399 = vmul.f32 %v396, %v398
    %v400 = vld [vmem:[%s11] sm:$0x1]
    %v402 = vlaneseq
    %v403 = vshrl.u32 %v402, 7
    %v404 = vsub.s32 0, %v403
    %v405 = vrot.slane %v400, %v404
    %v407 = vmul.f32 %v399, %v405
    %v408 = vld [vmem:[%s12] sm:$0x1]
    %v410 = vlaneseq
    %v411 = vshrl.u32 %v410, 7
    %v412 = vsub.s32 0, %v411
    %v413 = vrot.slane %v408, %v412
    %v415 = vadd.f32 %v407, %v413
    %v416 = vpack.c.bf16 %v415, %v415
    %v417 = vld [vmem:[%s13] sm:$0xf]
    %v418 = vld [vmem:[%s13 + $0x4] sm:$0xf]
    %v419 = vld [vmem:[%s13 + $0x8] sm:$0xf]
    %v420 = vld [vmem:[%s13 + $0xc] sm:$0xf]
    %v421 = vld [vmem:[%s13 + $0x10] sm:$0xf]
    %v422 = vld [vmem:[%s13 + $0x14] sm:$0xf]
    %v423 = vld [vmem:[%s13 + $0x18] sm:$0xf]
    %v424 = vld [vmem:[%s13 + $0x1c] sm:$0xf]
    %v425 = vld [vmem:[%s13 + $0x20] sm:$0xf]
    %v426 = vld [vmem:[%s13 + $0x24] sm:$0xf]
    %v427 = vld [vmem:[%s13 + $0x28] sm:$0xf]
    %v428 = vld [vmem:[%s13 + $0x2c] sm:$0xf]
    %v429 = vld [vmem:[%s13 + $0x30] sm:$0xf]
    %v430 = vld [vmem:[%s13 + $0x34] sm:$0xf]
    %v431 = vld [vmem:[%s13 + $0x38] sm:$0xf]
    %v432 = vld [vmem:[%s13 + $0x3c] sm:$0xf]
    %v433 = vld [vmem:[%s14] sm:$0x1]
    %v435 = vlaneseq
    %v436 = vshrl.u32 %v435, 7
    %v437 = vsub.s32 0, %v436
    %v438 = vrot.slane %v433, %v437
    %v456 = vunpack.c.l.b16 %v417
    %v457 = vunpack.c.l.b16 %v418
    %v458 = vunpack.c.l.b16 %v419
    %v459 = vunpack.c.l.b16 %v420
    %v460 = vunpack.c.l.b16 %v421
    %v461 = vunpack.c.l.b16 %v422
    %v462 = vunpack.c.l.b16 %v423
    %v463 = vunpack.c.l.b16 %v424
    %v464 = vunpack.c.l.b16 %v425
    %v465 = vunpack.c.l.b16 %v426
    %v466 = vunpack.c.l.b16 %v427
    %v467 = vunpack.c.l.b16 %v428
    %v468 = vunpack.c.l.b16 %v429
    %v469 = vunpack.c.l.b16 %v430
    %v470 = vunpack.c.l.b16 %v431
    %v471 = vunpack.c.l.b16 %v432
    %v472 = vpack.c.b16 %v457, %v456
    %v473 = vpack.c.b16 %v459, %v458
    %v474 = vpack.c.b16 %v461, %v460
    %v475 = vpack.c.b16 %v463, %v462
    %v476 = vpack.c.b16 %v465, %v464
    %v477 = vpack.c.b16 %v467, %v466
    %v478 = vpack.c.b16 %v469, %v468
    %v479 = vpack.c.b16 %v471, %v470
    %488 = vmatprep.subr.bf16.mxu0 0
    %489 = vmatpush1.bf16.msra.mxu0 %v472
    %490 = vmatprep.subr.bf16.mxu0 0
    %491 = vmatpush1.bf16.msra.mxu0 %v473
    %492 = vmatprep.subr.bf16.mxu0 0
    %493 = vmatpush1.bf16.msra.mxu0 %v474
    %494 = vmatprep.subr.bf16.mxu0 0
    %495 = vmatpush1.bf16.msra.mxu0 %v475
    %496 = vmatprep.subr.bf16.mxu0 0
    %497 = vmatpush1.bf16.msra.mxu0 %v476
    %498 = vmatprep.subr.bf16.mxu0 0
    %499 = vmatpush1.bf16.msra.mxu0 %v477
    %500 = vmatprep.subr.bf16.mxu0 0
    %501 = vmatpush1.bf16.msra.mxu0 %v478
    %502 = vmatprep.subr.bf16.mxu0 0
    %503 = vmatpush1.bf16.msra.mxu0 %v479
    %504 = vmatprep.subr.bf16.mxu0 0
    %505 = vmatpush1.bf16.msra.mxu0 0
    %506 = vmatprep.subr.bf16.mxu0 0
    %507 = vmatpush1.bf16.msra.mxu0 0
    %508 = vmatprep.subr.bf16.mxu0 0
    %509 = vmatpush1.bf16.msra.mxu0 0
    %510 = vmatprep.subr.bf16.mxu0 0
    %511 = vmatpush1.bf16.msra.mxu0 0
    %512 = vmatprep.subr.bf16.mxu0 0
    %513 = vmatpush1.bf16.msra.mxu0 0
    %514 = vmatprep.subr.bf16.mxu0 0
    %515 = vmatpush1.bf16.msra.mxu0 0
    %516 = vmatprep.subr.bf16.mxu0 0
    %517 = vmatpush1.bf16.msra.mxu0 0
    %518 = vmatprep.subr.bf16.mxu0 0
    %519 = vmatpush1.bf16.msra.mxu0 0
    %520 = vmatprep.mubr.bf16.mxu0 0
    %521 = vmatmul.mubr.bf16.gmra.mrb[0].mxu0 %v416
    %v522 = vpop.f32.mrb[0].mxu0
    %v523 = vadd.f32 %v438, %v522
    %v524 = vpop.f32.mrb[0].mxu0
    %v525 = vpop.f32.mrb[0].mxu0
    %v526 = vpop.f32.mrb[0].mxu0
    %527 = vdwg.mxu0
    %v528 = vmax.f32 %v523, 0.0
    %v529 = vsel %vm126, %v528, 0.0
    %530 = vadd.xlane.f32.xlu0 %v529
    %v531 = vpop.xlane.xlu0 %530
    %v532 = vmul.f32 %v528, %v528
    %v533 = vsel %vm126, %v532, 0.0
    %534 = vadd.xlane.f32.xlu0 %v533
    %v535 = vpop.xlane.xlu0 %534
    %v536 = vmul.f32 %v531, 0.015625
    %v537 = vmul.f32 %v535, 0.015625
    %v538 = vmul.f32 %v536, %v536
    %v539 = vsub.f32 %v537, %v538
    %v540 = vmax.f32 %v539, 0.0
    %v541 = vsub.f32 %v528, %v536
    %v542 = vadd.f32 %v540, 1e-05
    %v543 = vrsqrt.pop %v542
    %v544 = vmul.f32 %v541, %v543
    %v545 = vld [vmem:[%s15] sm:$0x1]
    %v547 = vlaneseq
    %v548 = vshrl.u32 %v547, 7
    %v549 = vsub.s32 0, %v548
    %v550 = vrot.slane %v545, %v549
    %v552 = vmul.f32 %v544, %v550
    %v553 = vld [vmem:[%s16] sm:$0x1]
    %v555 = vlaneseq
    %v556 = vshrl.u32 %v555, 7
    %v557 = vsub.s32 0, %v556
    %v558 = vrot.slane %v553, %v557
    %v560 = vadd.f32 %v552, %v558
    %v561 = vpack.c.bf16 %v560, %v560
    %v562 = vld [vmem:[%s17] sm:$0xf]
    %v563 = vld [vmem:[%s17 + $0x4] sm:$0xf]
    %v564 = vld [vmem:[%s17 + $0x8] sm:$0xf]
    %v565 = vld [vmem:[%s17 + $0xc] sm:$0xf]
    %v566 = vld [vmem:[%s17 + $0x10] sm:$0xf]
    %v567 = vld [vmem:[%s17 + $0x14] sm:$0xf]
    %v568 = vld [vmem:[%s17 + $0x18] sm:$0xf]
    %v569 = vld [vmem:[%s17 + $0x1c] sm:$0xf]
    %v570 = vld [vmem:[%s18] sm:$0x1]
    %v572 = vlaneseq
    %v573 = vshrl.u32 %v572, 7
    %v574 = vsub.s32 0, %v573
    %v575 = vrot.slane %v570, %v574
    %v585 = vunpack.c.l.b16 %v562
    %v586 = vunpack.c.l.b16 %v563
    %v587 = vunpack.c.l.b16 %v564
    %v588 = vunpack.c.l.b16 %v565
    %v589 = vunpack.c.l.b16 %v566
    %v590 = vunpack.c.l.b16 %v567
    %v591 = vunpack.c.l.b16 %v568
    %v592 = vunpack.c.l.b16 %v569
    %v593 = vpack.c.b16 %v586, %v585
    %v594 = vpack.c.b16 %v588, %v587
    %v595 = vpack.c.b16 %v590, %v589
    %v596 = vpack.c.b16 %v592, %v591
    %v602 = vsel %vm126, %v561, 0
    %604 = vmatprep.subr.bf16.mxu0 0
    %605 = vmatpush1.bf16.msra.mxu0 %v593
    %606 = vmatprep.subr.bf16.mxu0 0
    %607 = vmatpush1.bf16.msra.mxu0 %v594
    %608 = vmatprep.subr.bf16.mxu0 0
    %609 = vmatpush1.bf16.msra.mxu0 %v595
    %610 = vmatprep.subr.bf16.mxu0 0
    %611 = vmatpush1.bf16.msra.mxu0 %v596
    %612 = vmatprep.subr.bf16.mxu0 0
    %613 = vmatpush1.bf16.msra.mxu0 0
    %614 = vmatprep.subr.bf16.mxu0 0
    %615 = vmatpush1.bf16.msra.mxu0 0
    %616 = vmatprep.subr.bf16.mxu0 0
    %617 = vmatpush1.bf16.msra.mxu0 0
    %618 = vmatprep.subr.bf16.mxu0 0
    %619 = vmatpush1.bf16.msra.mxu0 0
    %620 = vmatprep.subr.bf16.mxu0 0
    %621 = vmatpush1.bf16.msra.mxu0 0
    %622 = vmatprep.subr.bf16.mxu0 0
    %623 = vmatpush1.bf16.msra.mxu0 0
    %624 = vmatprep.subr.bf16.mxu0 0
    %625 = vmatpush1.bf16.msra.mxu0 0
    %626 = vmatprep.subr.bf16.mxu0 0
    %627 = vmatpush1.bf16.msra.mxu0 0
    %628 = vmatprep.subr.bf16.mxu0 0
    %629 = vmatpush1.bf16.msra.mxu0 0
    %630 = vmatprep.subr.bf16.mxu0 0
    %631 = vmatpush1.bf16.msra.mxu0 0
    %632 = vmatprep.subr.bf16.mxu0 0
    %633 = vmatpush1.bf16.msra.mxu0 0
    %634 = vmatprep.subr.bf16.mxu0 0
    %635 = vmatpush1.bf16.msra.mxu0 0
    %636 = vmatprep.mubr.bf16.mxu0 0
    %637 = vmatmul.mubr.bf16.gmra.mrb[0].mxu0 %v602
    %v638 = vpop.f32.mrb[0].mxu0
    %v639 = vadd.f32 %v575, %v638
    %v640 = vpop.f32.mrb[0].mxu0
    %v641 = vpop.f32.mrb[0].mxu0
    %v642 = vpop.f32.mrb[0].mxu0
    %643 = vdwg.mxu0
    %v644 = vlaneseq
    %v645 = vand.u32 %v644, 127
    %v646 = vmax.f32 %v639, -20.0
    %v647 = vmin.f32 %v646, 2.0
    %v648 = vmul.f32 %v647, 1.442695
    %v649 = vpow.pop %v648
    %vm650 = vcmp.lt.s32.totalorder %v645, 4
    %v651 = vsel %vm650, %v639, %v649
    %vm652 = vcmask 64512
    %653 = vst.msk [vmem:[#allocation2] sm:$0xff] %vm652, %v651
    // Predicated region
    $region78: #{tpu_custom_call.1} parent=1 // pred_check
      _
    $region79: #{tpu_custom_call.1} parent=1 // pred_check_branch
      %655 = sbr.rel (0) target = $region81
    $region80: #{tpu_custom_call.1} parent=1 // pred_region
      %s657 = ssub.s32 128, 128
      %658 = vsyncadd [#allocation3], %s657
      %s660 = sshll.u32 [#allocation2], 4
      %s661 = int_to_ptr.vmem [resolvable:$true] %s660
      %663 = dma.vmem_to_hbm [thread:$0]  %s661, 128, %s19, [#allocation3]
    $region81: #{tpu_custom_call.1} parent=1 // pred_fallthru
      _
    // Predicated region
    $region82: #{tpu_custom_call.1} parent=1 // pred_check
      _
    $region83: #{tpu_custom_call.1} parent=1 // pred_check_branch
      %665 = sbr.rel (0) target = $region85
    $region84: #{tpu_custom_call.1} parent=1 // pred_region
      %666 = dma.done [#allocation3], 128
    $region85: #{tpu_custom_call.1} parent=1 // pred_fallthru
      _
    %667 = vsyncpa [#allocation3], 1

</llo_original>
